<compile_context>
chip_gen: v7x
topology: tpu7x:2x2x1
jax: 0.10.0
libtpu: 0.0.40
codegen_flags: <defaults>
</compile_context>

<pallas_src>
import functools
import math

import jax
import jax.numpy as jnp
from jax.experimental import pallas as pl
from jax.experimental.pallas import tpu as pltpu


# ----------------------------------------------------------------------------
# Pallas kernels
# ----------------------------------------------------------------------------
def _mlp_kernel(t_ref, slab_ref, w2_ref, w3_ref, o_ref, *, hidden_dim, dim):
    """Linear(1,H) -> ReLU -> Linear(H,H) -> ReLU -> Linear(H,dim).

    slab_ref packs [w1 | b1 | b2 | b3] along the lane axis: (1, 3H + dim).
    """
    H, D = hidden_dim, dim
    t = t_ref[...]                                       # (B, 1) f32
    w1 = slab_ref[:, 0:H]                                # (1, H)
    b1 = slab_ref[:, H:2 * H]                            # (1, H)
    b2 = slab_ref[:, 2 * H:3 * H]                        # (1, H)
    b3 = slab_ref[:, 3 * H:3 * H + D]                    # (1, D)

    # K=1 contraction == outer product: pure VPU broadcast, no MXU round trip.
    h = jnp.maximum(t * w1 + b1, 0.0)                    # (B, H) f32
    # bf16 inputs, f32 accumulation on the MXU; epilogue stays f32.
    h = jnp.dot(h.astype(w2_ref.dtype), w2_ref[...],
                preferred_element_type=jnp.float32) + b2
    h = jnp.maximum(h, 0.0)
    o = jnp.dot(h.astype(w3_ref.dtype), w3_ref[...],
                preferred_element_type=jnp.float32) + b3
    o_ref[...] = o.astype(o_ref.dtype)


def _sinusoidal_kernel(t_ref, fp_ref, o_ref):
    """out = sin(t * freqs + phase).

    fp_ref row 0: [freqs, freqs (, 0 pad)]   row 1: [0..., pi/2... (, 0 pad)]
    cos(x) = sin(x + pi/2); the odd-dim pad lane has freq=phase=0 -> sin(0)=0,
    so the whole (B, dim) tile is one lane-dense sin + one unmasked-ish store.
    """
    t = t_ref[...]                                       # (B, 1)   f32
    f = fp_ref[0:1, :]                                   # (1, dim) f32
    ph = fp_ref[1:2, :]                                  # (1, dim) f32
    o_ref[...] = jnp.sin(t * f + ph).astype(o_ref.dtype)


# ----------------------------------------------------------------------------
# Wrapper (parameter setup + pallas_call glue)
# ----------------------------------------------------------------------------
class TimeEmbedding:
    def __init__(self, dim, embedding_type="linear", use_time_embedding=True,
                 hidden_dim=256, key=None):
        self.dim = dim
        self.embedding_type = embedding_type
        self.use_time_embedding = use_time_embedding
        self.hidden_dim = hidden_dim

        if embedding_type == "sinusoidal":
            half_dim = dim // 2
            # torch formula is log(10000)/(half_dim-1); guard half_dim==1
            # (dim 2 or 3) against division by zero -> inf/nan freqs.
            denom = max(half_dim - 1, 1)
            scale = math.log(10000.0) / denom
            freqs = jnp.exp(jnp.arange(half_dim, dtype=jnp.float32) * -scale)
            self.emb = freqs                              # (half_dim,) reference
            f_row = jnp.concatenate([freqs, freqs])       # (2*half_dim,)
            p_row = jnp.concatenate([
                jnp.zeros((half_dim,), jnp.float32),
                jnp.full((half_dim,), 0.5 * math.pi, jnp.float32)])
            if dim % 2 == 1:                              # pad lane: freq=phase=0
                f_row = jnp.pad(f_row, (0, 1))
                p_row = jnp.pad(p_row, (0, 1))
            self.freq_phase = jnp.stack([f_row, p_row], axis=0)   # (2, dim)
        elif embedding_type == "linear":
            if key is None:
                key = jax.random.PRNGKey(0)
            k1, k2, k3, k4, k5, k6 = jax.random.split(key, 6)
            # nn.Linear-shaped params, pre-transposed to (in, out).
            w1 = jax.random.normal(k1, (1, hidden_dim), jnp.float32) * 0.5
            b1 = jax.random.normal(k2, (1, hidden_dim), jnp.float32) * 0.1
            b2 = jax.random.normal(k4, (1, hidden_dim), jnp.float32) * 0.1
            b3 = jax.random.normal(k6, (1, dim), jnp.float32) * 0.1
            # Keep unpacked copies for the pure-JAX reference.
            self.w1, self.b1, self.b2, self.b3 = w1, b1, b2, b3
            # Single packed slab for the kernel: [w1 | b1 | b2 | b3].
            self.slab = jnp.concatenate([w1, b1, b2, b3], axis=-1)  # (1, 3H+D)
            # w2/w3 in bf16: halves HBM->VMEM weight DMA, native MXU bf16 rate.
            self.w2 = (jax.random.normal(k3, (hidden_dim, hidden_dim), jnp.float32)
                       * 0.05).astype(jnp.bfloat16)
            self.w3 = (jax.random.normal(k5, (hidden_dim, dim), jnp.float32)
                       * 0.05).astype(jnp.bfloat16)

        # One executable per input shape: cast/unsqueeze + pallas_call fused.
        self._jit_forward = jax.jit(self._forward)

    # -- pallas_call builders ------------------------------------------------
    @staticmethod
    def _full(shape):
        # grid=(1,): single program, block == full array (satisfies the
        # (8,128) rule via full-extent blocks).
        return pl.BlockSpec(shape, lambda i: (0,) * len(shape))

    def _mlp_pallas(self, t2d):
        B = t2d.shape[0]
        H, D = self.hidden_dim, self.dim
        kern = functools.partial(_mlp_kernel, hidden_dim=H, dim=D)
        return pl.pallas_call(
            kern,
            out_shape=jax.ShapeDtypeStruct((B, D), jnp.float32),
            grid=(1,),
            in_specs=[
                self._full((B, 1)),
                self._full((1, 3 * H + D)),
                self._full((H, H)),
                self._full((H, D)),
            ],
            out_specs=self._full((B, D)),
            compiler_params=pltpu.CompilerParams(
                dimension_semantics=("arbitrary",),
                vmem_limit_bytes=4 << 20),
        )(t2d, self.slab, self.w2, self.w3)

    def _sinusoidal_pallas(self, t2d):
        B = t2d.shape[0]
        return pl.pallas_call(
            _sinusoidal_kernel,
            out_shape=jax.ShapeDtypeStruct((B, self.dim), jnp.float32),
            grid=(1,),
            in_specs=[self._full((B, 1)), self._full((2, self.dim))],
            out_specs=self._full((B, self.dim)),
            compiler_params=pltpu.CompilerParams(
                dimension_semantics=("arbitrary",),
                vmem_limit_bytes=4 << 20),
        )(t2d, self.freq_phase)

    # -- forward -------------------------------------------------------------
    def _forward(self, time):
        if not self.use_time_embedding:
            return jnp.zeros((time.shape[0], self.dim), jnp.float32)
        t2d = time.astype(jnp.float32)[:, None]           # unsqueeze(-1).float()
        if self.embedding_type == "sinusoidal":
            return self._sinusoidal_pallas(t2d)
        return self._mlp_pallas(t2d)

    def __call__(self, time):
        return self._jit_forward(time)

    # -- pure-JAX reference for verification ---------------------------------
    def reference(self, time):
        if not self.use_time_embedding:
            return jnp.zeros((time.shape[0], self.dim), jnp.float32)
        t = time.astype(jnp.float32)[:, None]
        if self.embedding_type == "sinusoidal":
            e = t * self.emb[None, :]
            out = jnp.concatenate([jnp.sin(e), jnp.cos(e)], axis=-1)
            if self.dim % 2 == 1:
                out = jnp.pad(out, ((0, 0), (0, 1)))
            return out
        # f32 math using the (bf16-quantized) weights upcast to f32.
        # NOTE: the kernel additionally casts activations to bf16 at the MXU
        # inputs, so compare with a relative tolerance.
        w2 = self.w2.astype(jnp.float32)
        w3 = self.w3.astype(jnp.float32)
        h = jnp.maximum(t * self.w1 + self.b1, 0.0)
        h = jnp.maximum(h @ w2 + self.b2, 0.0)
        return h @ w3 + self.b3


# ----------------------------------------------------------------------------
if __name__ == "__main__":
    key = jax.random.PRNGKey(0)
    k_param, k_time = jax.random.split(key)

    B, DIM, HIDDEN = 8, 128, 256
    time = jax.random.uniform(k_time, (B,), jnp.float32, 0.0, 1000.0)

    # Linear (default) path — MLP hot path runs inside the Pallas kernel.
    te_linear = TimeEmbedding(DIM, embedding_type="linear",
                              hidden_dim=HIDDEN, key=k_param)
    out_linear = jax.block_until_ready(te_linear(time))
    ref_linear = te_linear.reference(time)
    assert out_linear.shape == (B, DIM)
    rel_err = jnp.max(jnp.abs(out_linear - ref_linear)) / (
        jnp.max(jnp.abs(ref_linear)) + 1e-6)
    assert rel_err < 2e-2, f"linear path rel_err={rel_err}"

    # Sinusoidal path — single phase-offset sin over the full (B, dim) tile.
    te_sin = TimeEmbedding(DIM, embedding_type="sinusoidal")
    out_sin = jax.block_until_ready(te_sin(time))
    ref_sin = te_sin.reference(time)
    assert out_sin.shape == (B, DIM)
    assert jnp.allclose(out_sin, ref_sin, atol=1e-4, rtol=1e-4)

    # Odd-dim sinusoidal: zero-pad column produced inside the kernel
    # (freq=0, phase=0 lane -> sin(0)=0).
    te_odd = TimeEmbedding(65, embedding_type="sinusoidal")
    out_odd = jax.block_until_ready(te_odd(time))
    ref_odd = te_odd.reference(time)
    assert out_odd.shape == (B, 65)
    assert jnp.allclose(out_odd, ref_odd, atol=1e-4, rtol=1e-4)

    # use_time_embedding=False path (no kernel; semantics check only).
    te_off = TimeEmbedding(DIM, embedding_type="linear",
                           use_time_embedding=False, key=k_param)
    out_off = jax.block_until_ready(te_off(time))
    assert out_off.shape == (B, DIM) and float(jnp.abs(out_off).max()) == 0.0

    print("KERNEL_OK")
</pallas_src>

<mosaic_0001>
module attributes {stable_mosaic.version = 11 : i64} {
  func.func @_mlp_kernel(%arg0: i32, %arg1: memref<8x1xf32, #tpu.memory_space<vmem>>, %arg2: memref<1x896xf32, #tpu.memory_space<vmem>>, %arg3: memref<256x256xbf16, #tpu.memory_space<vmem>>, %arg4: memref<256x128xbf16, #tpu.memory_space<vmem>>, %arg5: memref<8x128xf32, #tpu.memory_space<vmem>>) attributes {dimension_semantics = [#tpu.dimension_semantics<arbitrary>], iteration_bounds = array<i64: 1>, scalar_prefetch = 0 : i64, scratch_operands = 0 : i64, tpu.core_type = #tpu.core_type<tc>, window_params = [{pipeline_mode = #tpu.pipeline_mode<synchronous>, transform_indices = @transform_0, window_bounds = array<i64: 8, 1>}, {pipeline_mode = #tpu.pipeline_mode<synchronous>, transform_indices = @transform_1, window_bounds = array<i64: 1, 896>}, {pipeline_mode = #tpu.pipeline_mode<synchronous>, transform_indices = @transform_2, window_bounds = array<i64: 256, 256>}, {pipeline_mode = #tpu.pipeline_mode<synchronous>, transform_indices = @transform_3, window_bounds = array<i64: 256, 128>}, {pipeline_mode = #tpu.pipeline_mode<synchronous>, transform_indices = @transform_4, window_bounds = array<i64: 8, 128>}]} {
    %c0 = arith.constant 0 : index
    %c0_0 = arith.constant 0 : index
    %0 = vector.load %arg1[%c0, %c0_0] : memref<8x1xf32, #tpu.memory_space<vmem>>, vector<8x1xf32>
    %c0_1 = arith.constant 0 : index
    %c0_2 = arith.constant 0 : index
    %1 = vector.load %arg2[%c0_1, %c0_2] : memref<1x896xf32, #tpu.memory_space<vmem>>, vector<1x256xf32>
    %c0_3 = arith.constant 0 : index
    %c256 = arith.constant 256 : index
    %2 = vector.load %arg2[%c0_3, %c256] : memref<1x896xf32, #tpu.memory_space<vmem>>, vector<1x256xf32>
    %c0_4 = arith.constant 0 : index
    %c512 = arith.constant 512 : index
    %3 = vector.load %arg2[%c0_4, %c512] : memref<1x896xf32, #tpu.memory_space<vmem>>, vector<1x256xf32>
    %c0_5 = arith.constant 0 : index
    %c768 = arith.constant 768 : index
    %4 = vector.load %arg2[%c0_5, %c768] : memref<1x896xf32, #tpu.memory_space<vmem>>, vector<1x128xf32>
    %5 = vector.broadcast %0 : vector<8x1xf32> to vector<8x256xf32>
    %6 = vector.broadcast %1 : vector<1x256xf32> to vector<8x256xf32>
    %7 = arith.mulf %5, %6 : vector<8x256xf32>
    %8 = vector.broadcast %2 : vector<1x256xf32> to vector<8x256xf32>
    %9 = arith.addf %7, %8 : vector<8x256xf32>
    %cst = arith.constant 0.000000e+00 : f32
    %10 = vector.broadcast %cst : f32 to vector<8x256xf32>
    %11 = arith.maximumf %9, %10 : vector<8x256xf32>
    %12 = arith.truncf %11 : vector<8x256xf32> to vector<8x256xbf16>
    %c0_6 = arith.constant 0 : index
    %c0_7 = arith.constant 0 : index
    %13 = vector.load %arg3[%c0_6, %c0_7] : memref<256x256xbf16, #tpu.memory_space<vmem>>, vector<256x256xbf16>
    %cst_8 = arith.constant dense<0.000000e+00> : vector<8x256xf32>
    %14 = tpu.matmul %12, %13, %cst_8 {dimension_numbers = #tpu.dot_dimension_numbers<[1], [0], [0], [1], [0, 0, 1, 1], [], []>} : vector<8x256xbf16>, vector<256x256xbf16>, vector<8x256xf32> -> vector<8x256xf32>
    %15 = vector.broadcast %3 : vector<1x256xf32> to vector<8x256xf32>
    %16 = arith.addf %14, %15 : vector<8x256xf32>
    %cst_9 = arith.constant 0.000000e+00 : f32
    %17 = vector.broadcast %cst_9 : f32 to vector<8x256xf32>
    %18 = arith.maximumf %16, %17 : vector<8x256xf32>
    %19 = arith.truncf %18 : vector<8x256xf32> to vector<8x256xbf16>
    %c0_10 = arith.constant 0 : index
    %c0_11 = arith.constant 0 : index
    %20 = vector.load %arg4[%c0_10, %c0_11] : memref<256x128xbf16, #tpu.memory_space<vmem>>, vector<256x128xbf16>
    %cst_12 = arith.constant dense<0.000000e+00> : vector<8x128xf32>
    %21 = tpu.matmul %19, %20, %cst_12 {dimension_numbers = #tpu.dot_dimension_numbers<[1], [0], [0], [1], [0, 0, 1, 1], [], []>} : vector<8x256xbf16>, vector<256x128xbf16>, vector<8x128xf32> -> vector<8x128xf32>
    %22 = vector.broadcast %4 : vector<1x128xf32> to vector<8x128xf32>
    %23 = arith.addf %21, %22 : vector<8x128xf32>
    %c0_13 = arith.constant 0 : index
    %c0_14 = arith.constant 0 : index
    %24 = vector.load %arg5[%c0_13, %c0_14] : memref<8x128xf32, #tpu.memory_space<vmem>>, vector<8x128xf32>
    tpu.vector_store %arg5[%c0_13, %c0_14], %23 {strides = array<i32>} : memref<8x128xf32, #tpu.memory_space<vmem>>, vector<8x128xf32>,
    return
  }
  func.func @transform_0(%arg0: i32) -> (i32, i32) {
    %c0_i32 = arith.constant 0 : i32
    %c0_i32_0 = arith.constant 0 : i32
    %c0_i32_1 = arith.constant 0 : i32
    return %c0_i32, %c0_i32_0 : i32, i32
  }
  func.func @transform_1(%arg0: i32) -> (i32, i32) {
    %c0_i32 = arith.constant 0 : i32
    %c0_i32_0 = arith.constant 0 : i32
    %c0_i32_1 = arith.constant 0 : i32
    return %c0_i32, %c0_i32_0 : i32, i32
  }
  func.func @transform_2(%arg0: i32) -> (i32, i32) {
    %c0_i32 = arith.constant 0 : i32
    %c0_i32_0 = arith.constant 0 : i32
    %c0_i32_1 = arith.constant 0 : i32
    return %c0_i32, %c0_i32_0 : i32, i32
  }
  func.func @transform_3(%arg0: i32) -> (i32, i32) {
    %c0_i32 = arith.constant 0 : i32
    %c0_i32_0 = arith.constant 0 : i32
    %c0_i32_1 = arith.constant 0 : i32
    return %c0_i32, %c0_i32_0 : i32, i32
  }
  func.func @transform_4(%arg0: i32) -> (i32, i32) {
    %c0_i32 = arith.constant 0 : i32
    %c0_i32_0 = arith.constant 0 : i32
    %c0_i32_1 = arith.constant 0 : i32
    return %c0_i32, %c0_i32_0 : i32, i32
  }
}

</mosaic_0001>

<llo_original>
// kernel: _forward.1
$region0: #{_forward.1}
  #allocation0 [shape = 'u32[]', space=smem, size = 0x4, offset = 0x4, fixed_abs, tag = 'smem constant byte address 0x4 - core index']
  #allocation1 [shape = 'u32[144,128]{1,0:T(1,128)}', space=vmem, size = 0x12000, scoped, tag = 'internal scratch']
  %s0 = inlined_call_operand.vmem [shape: f32[8,1], index: 0, kind: input, shape index: {}]
  %s1 = inlined_call_operand.vmem [shape: f32[1,896], index: 1, kind: input, shape index: {}]
  %s2 = inlined_call_operand.vmem [shape: bf16[256,256], index: 2, kind: input, shape index: {}]
  %s3 = inlined_call_operand.vmem [shape: bf16[256,128], index: 3, kind: input, shape index: {}]
  %s4 = inlined_call_operand.hbm [shape: f32[8,128], index: 4, kind: output, shape index: {}]
  %s5 = sld [smem:[#allocation0]]
  $region26: #{_forward.1} parent=0
    _
  %s7 = ssub.s32 1, %s5
  %s8 = scalar_select 0, %s7, %s5
  $region1: #{_forward.1} parent=0
    #allocation2 [shape = 'u8[4096]{0}', space=vmem, size = 0x1000, scoped, tag = 'output window, operand 0, single buffered']
    #allocation3 [shape = 's32[1]{0}', space=sflag, size = 0x4, scoped, tag = 'scoped memory for _forward.1']
    %9 = vsyncpa [#allocation3], 0
    // Predicated region
    $region2: #{_forward.1} parent=1 // pred_check
      _
    $region3: #{_forward.1} parent=1 // pred_check_branch
      %11 = sbr.rel (0) target = $region5
    $region4: #{_forward.1} parent=1 // pred_region
      _
    $region5: #{_forward.1} parent=1 // pred_fallthru
      _
    // Predicated region
    $region6: #{_forward.1} parent=1 // pred_check
      _
    $region7: #{_forward.1} parent=1 // pred_check_branch
      %13 = sbr.rel (0) target = $region9
    $region8: #{_forward.1} parent=1 // pred_region
      _
    $region9: #{_forward.1} parent=1 // pred_fallthru
      _
    // Predicated region
    $region10: #{_forward.1} parent=1 // pred_check
      _
    $region11: #{_forward.1} parent=1 // pred_check_branch
      %15 = sbr.rel (0) target = $region13
    $region12: #{_forward.1} parent=1 // pred_region
      _
    $region13: #{_forward.1} parent=1 // pred_fallthru
      _
    // Predicated region
    $region14: #{_forward.1} parent=1 // pred_check
      _
    $region15: #{_forward.1} parent=1 // pred_check_branch
      %17 = sbr.rel (0) target = $region17
    $region16: #{_forward.1} parent=1 // pred_region
      _
    $region17: #{_forward.1} parent=1 // pred_fallthru
      _
    %v19 = vld [vmem:[%s0] sm:$0xff]
    %v20 = vld [vmem:[%s1] sm:$0x3]
    %v21 = vld [vmem:[%s1 + $0x2] sm:$0x3]
    %v22 = vld [vmem:[%s1 + $0x4] sm:$0x3]
    %v23 = vld [vmem:[%s1 + $0x6] sm:$0x1]
    %25 = vset.pattern.permute.xlu0 0
    %26 = vperm.xlu0 %25, %v19
    %v27 = vpop.permute.xlu0 %26
    %v30 = vlaneseq
    %v31 = vshrl.u32 %v30, 7
    %v32 = vsub.s32 0, %v31
    %v33 = vrot.slane %v20, %v32
    %v34 = vlaneseq
    %v35 = vshrl.u32 %v34, 7
    %v36 = vsub.s32 1, %v35
    %v37 = vrot.slane %v20, %v36
    %v40 = vmul.f32 %v27, %v33
    %v41 = vmul.f32 %v27, %v37
    %v43 = vlaneseq
    %v44 = vshrl.u32 %v43, 7
    %v45 = vsub.s32 0, %v44
    %v46 = vrot.slane %v21, %v45
    %v47 = vlaneseq
    %v48 = vshrl.u32 %v47, 7
    %v49 = vsub.s32 1, %v48
    %v50 = vrot.slane %v21, %v49
    %v53 = vadd.f32 %v40, %v46
    %v54 = vadd.f32 %v41, %v50
    %v55 = vmax.f32 %v53, 0.0
    %v56 = vmax.f32 %v54, 0.0
    %v57 = vpack.c.bf16 %v55, %v55
    %v58 = vpack.c.bf16 %v56, %v56
    %v59 = vld [vmem:[%s2] sm:$0xff]
    %v60 = vld [vmem:[%s2 + $0x8] sm:$0xff]
    %v61 = vld [vmem:[%s2 + $0x10] sm:$0xff]
    %v62 = vld [vmem:[%s2 + $0x18] sm:$0xff]
    %v63 = vld [vmem:[%s2 + $0x20] sm:$0xff]
    %v64 = vld [vmem:[%s2 + $0x28] sm:$0xff]
    %v65 = vld [vmem:[%s2 + $0x30] sm:$0xff]
    %v66 = vld [vmem:[%s2 + $0x38] sm:$0xff]
    %v67 = vld [vmem:[%s2 + $0x40] sm:$0xff]
    %v68 = vld [vmem:[%s2 + $0x48] sm:$0xff]
    %v69 = vld [vmem:[%s2 + $0x50] sm:$0xff]
    %v70 = vld [vmem:[%s2 + $0x58] sm:$0xff]
    %v71 = vld [vmem:[%s2 + $0x60] sm:$0xff]
    %v72 = vld [vmem:[%s2 + $0x68] sm:$0xff]
    %v73 = vld [vmem:[%s2 + $0x70] sm:$0xff]
    %v74 = vld [vmem:[%s2 + $0x78] sm:$0xff]
    %v75 = vld [vmem:[%s2 + $0x80] sm:$0xff]
    %v76 = vld [vmem:[%s2 + $0x88] sm:$0xff]
    %v77 = vld [vmem:[%s2 + $0x90] sm:$0xff]
    %v78 = vld [vmem:[%s2 + $0x98] sm:$0xff]
    %v79 = vld [vmem:[%s2 + $0xa0] sm:$0xff]
    %v80 = vld [vmem:[%s2 + $0xa8] sm:$0xff]
    %v81 = vld [vmem:[%s2 + $0xb0] sm:$0xff]
    %v82 = vld [vmem:[%s2 + $0xb8] sm:$0xff]
    %v83 = vld [vmem:[%s2 + $0xc0] sm:$0xff]
    %v84 = vld [vmem:[%s2 + $0xc8] sm:$0xff]
    %v85 = vld [vmem:[%s2 + $0xd0] sm:$0xff]
    %v86 = vld [vmem:[%s2 + $0xd8] sm:$0xff]
    %v87 = vld [vmem:[%s2 + $0xe0] sm:$0xff]
    %v88 = vld [vmem:[%s2 + $0xe8] sm:$0xff]
    %v89 = vld [vmem:[%s2 + $0xf0] sm:$0xff]
    %v90 = vld [vmem:[%s2 + $0xf8] sm:$0xff]
    %v92 = vlaneseq
    %v93 = vshrl.u32 %v92, 7
    %v94 = vsub.s32 0, %v93
    %v95 = vrot.slane %v22, %v94
    %v96 = vlaneseq
    %v97 = vshrl.u32 %v96, 7
    %v98 = vsub.s32 1, %v97
    %v99 = vrot.slane %v22, %v98
    %v134 = vunpack.c.l.b16 %v59
    %v135 = vunpack.c.h.b16 %v59
    %v136 = vunpack.c.l.b16 %v60
    %v137 = vunpack.c.h.b16 %v60
    %v138 = vunpack.c.l.b16 %v61
    %v139 = vunpack.c.h.b16 %v61
    %v140 = vunpack.c.l.b16 %v62
    %v141 = vunpack.c.h.b16 %v62
    %v142 = vunpack.c.l.b16 %v63
    %v143 = vunpack.c.h.b16 %v63
    %v144 = vunpack.c.l.b16 %v64
    %v145 = vunpack.c.h.b16 %v64
    %v146 = vunpack.c.l.b16 %v65
    %v147 = vunpack.c.h.b16 %v65
    %v148 = vunpack.c.l.b16 %v66
    %v149 = vunpack.c.h.b16 %v66
    %v150 = vunpack.c.l.b16 %v67
    %v151 = vunpack.c.h.b16 %v67
    %v152 = vunpack.c.l.b16 %v68
    %v153 = vunpack.c.h.b16 %v68
    %v154 = vunpack.c.l.b16 %v69
    %v155 = vunpack.c.h.b16 %v69
    %v156 = vunpack.c.l.b16 %v70
    %v157 = vunpack.c.h.b16 %v70
    %v158 = vunpack.c.l.b16 %v71
    %v159 = vunpack.c.h.b16 %v71
    %v160 = vunpack.c.l.b16 %v72
    %v161 = vunpack.c.h.b16 %v72
    %v162 = vunpack.c.l.b16 %v73
    %v163 = vunpack.c.h.b16 %v73
    %v164 = vunpack.c.l.b16 %v74
    %v165 = vunpack.c.h.b16 %v74
    %v166 = vunpack.c.l.b16 %v75
    %v167 = vunpack.c.h.b16 %v75
    %v168 = vunpack.c.l.b16 %v76
    %v169 = vunpack.c.h.b16 %v76
    %v170 = vunpack.c.l.b16 %v77
    %v171 = vunpack.c.h.b16 %v77
    %v172 = vunpack.c.l.b16 %v78
    %v173 = vunpack.c.h.b16 %v78
    %v174 = vunpack.c.l.b16 %v79
    %v175 = vunpack.c.h.b16 %v79
    %v176 = vunpack.c.l.b16 %v80
    %v177 = vunpack.c.h.b16 %v80
    %v178 = vunpack.c.l.b16 %v81
    %v179 = vunpack.c.h.b16 %v81
    %v180 = vunpack.c.l.b16 %v82
    %v181 = vunpack.c.h.b16 %v82
    %v182 = vunpack.c.l.b16 %v83
    %v183 = vunpack.c.h.b16 %v83
    %v184 = vunpack.c.l.b16 %v84
    %v185 = vunpack.c.h.b16 %v84
    %v186 = vunpack.c.l.b16 %v85
    %v187 = vunpack.c.h.b16 %v85
    %v188 = vunpack.c.l.b16 %v86
    %v189 = vunpack.c.h.b16 %v86
    %v190 = vunpack.c.l.b16 %v87
    %v191 = vunpack.c.h.b16 %v87
    %v192 = vunpack.c.l.b16 %v88
    %v193 = vunpack.c.h.b16 %v88
    %v194 = vunpack.c.l.b16 %v89
    %v195 = vunpack.c.h.b16 %v89
    %v196 = vunpack.c.l.b16 %v90
    %v197 = vunpack.c.h.b16 %v90
    %v198 = vpack.c.b16 %v136, %v134
    %v199 = vpack.c.b16 %v137, %v135
    %v200 = vpack.c.b16 %v140, %v138
    %v201 = vpack.c.b16 %v141, %v139
    %v202 = vpack.c.b16 %v144, %v142
    %v203 = vpack.c.b16 %v145, %v143
    %v204 = vpack.c.b16 %v148, %v146
    %v205 = vpack.c.b16 %v149, %v147
    %v206 = vpack.c.b16 %v152, %v150
    %v207 = vpack.c.b16 %v153, %v151
    %v208 = vpack.c.b16 %v156, %v154
    %v209 = vpack.c.b16 %v157, %v155
    %v210 = vpack.c.b16 %v160, %v158
    %v211 = vpack.c.b16 %v161, %v159
    %v212 = vpack.c.b16 %v164, %v162
    %v213 = vpack.c.b16 %v165, %v163
    %v214 = vpack.c.b16 %v168, %v166
    %v215 = vpack.c.b16 %v169, %v167
    %v216 = vpack.c.b16 %v172, %v170
    %v217 = vpack.c.b16 %v173, %v171
    %v218 = vpack.c.b16 %v176, %v174
    %v219 = vpack.c.b16 %v177, %v175
    %v220 = vpack.c.b16 %v180, %v178
    %v221 = vpack.c.b16 %v181, %v179
    %v222 = vpack.c.b16 %v184, %v182
    %v223 = vpack.c.b16 %v185, %v183
    %v224 = vpack.c.b16 %v188, %v186
    %v225 = vpack.c.b16 %v189, %v187
    %v226 = vpack.c.b16 %v192, %v190
    %v227 = vpack.c.b16 %v193, %v191
    %v228 = vpack.c.b16 %v196, %v194
    %v229 = vpack.c.b16 %v197, %v195
    %262 = vmatprep.subr.bf16.mxu0 %v199
    %263 = vmatpush1.bf16.msra.mxu0 %v198
    %264 = vmatprep.subr.bf16.mxu0 %v201
    %265 = vmatpush1.bf16.msra.mxu0 %v200
    %266 = vmatprep.subr.bf16.mxu0 %v203
    %267 = vmatpush1.bf16.msra.mxu0 %v202
    %268 = vmatprep.subr.bf16.mxu0 %v205
    %269 = vmatpush1.bf16.msra.mxu0 %v204
    %270 = vmatprep.subr.bf16.mxu0 %v207
    %271 = vmatpush1.bf16.msra.mxu0 %v206
    %272 = vmatprep.subr.bf16.mxu0 %v209
    %273 = vmatpush1.bf16.msra.mxu0 %v208
    %274 = vmatprep.subr.bf16.mxu0 %v211
    %275 = vmatpush1.bf16.msra.mxu0 %v210
    %276 = vmatprep.subr.bf16.mxu0 %v213
    %277 = vmatpush1.bf16.msra.mxu0 %v212
    %278 = vmatprep.subr.bf16.mxu0 %v215
    %279 = vmatpush1.bf16.msra.mxu0 %v214
    %280 = vmatprep.subr.bf16.mxu0 %v217
    %281 = vmatpush1.bf16.msra.mxu0 %v216
    %282 = vmatprep.subr.bf16.mxu0 %v219
    %283 = vmatpush1.bf16.msra.mxu0 %v218
    %284 = vmatprep.subr.bf16.mxu0 %v221
    %285 = vmatpush1.bf16.msra.mxu0 %v220
    %286 = vmatprep.subr.bf16.mxu0 %v223
    %287 = vmatpush1.bf16.msra.mxu0 %v222
    %288 = vmatprep.subr.bf16.mxu0 %v225
    %289 = vmatpush1.bf16.msra.mxu0 %v224
    %290 = vmatprep.subr.bf16.mxu0 %v227
    %291 = vmatpush1.bf16.msra.mxu0 %v226
    %292 = vmatprep.subr.bf16.mxu0 %v229
    %293 = vmatpush1.bf16.msra.mxu0 %v228
    %294 = vmatprep.mubr.bf16.mxu0 %v58
    %295 = vmatmul.mubr.bf16.gmra.mrb[0].mxu0 %v57
    %v296 = vpop.f32.mrb[0].mxu0
    %v297 = vadd.f32 %v95, %v296
    %v298 = vpop.f32.mrb[0].mxu0
    %v299 = vadd.f32 %v99, %v298
    %v300 = vpop.f32.mrb[0].mxu0
    %v301 = vpop.f32.mrb[0].mxu0
    %302 = vdwg.mxu0
    %v303 = vmax.f32 %v297, 0.0
    %v304 = vmax.f32 %v299, 0.0
    %v305 = vpack.c.bf16 %v303, %v303
    %v306 = vpack.c.bf16 %v304, %v304
    %v307 = vld [vmem:[%s3] sm:$0xf]
    %v308 = vld [vmem:[%s3 + $0x4] sm:$0xf]
    %v309 = vld [vmem:[%s3 + $0x8] sm:$0xf]
    %v310 = vld [vmem:[%s3 + $0xc] sm:$0xf]
    %v311 = vld [vmem:[%s3 + $0x10] sm:$0xf]
    %v312 = vld [vmem:[%s3 + $0x14] sm:$0xf]
    %v313 = vld [vmem:[%s3 + $0x18] sm:$0xf]
    %v314 = vld [vmem:[%s3 + $0x1c] sm:$0xf]
    %v315 = vld [vmem:[%s3 + $0x20] sm:$0xf]
    %v316 = vld [vmem:[%s3 + $0x24] sm:$0xf]
    %v317 = vld [vmem:[%s3 + $0x28] sm:$0xf]
    %v318 = vld [vmem:[%s3 + $0x2c] sm:$0xf]
    %v319 = vld [vmem:[%s3 + $0x30] sm:$0xf]
    %v320 = vld [vmem:[%s3 + $0x34] sm:$0xf]
    %v321 = vld [vmem:[%s3 + $0x38] sm:$0xf]
    %v322 = vld [vmem:[%s3 + $0x3c] sm:$0xf]
    %v323 = vld [vmem:[%s3 + $0x40] sm:$0xf]
    %v324 = vld [vmem:[%s3 + $0x44] sm:$0xf]
    %v325 = vld [vmem:[%s3 + $0x48] sm:$0xf]
    %v326 = vld [vmem:[%s3 + $0x4c] sm:$0xf]
    %v327 = vld [vmem:[%s3 + $0x50] sm:$0xf]
    %v328 = vld [vmem:[%s3 + $0x54] sm:$0xf]
    %v329 = vld [vmem:[%s3 + $0x58] sm:$0xf]
    %v330 = vld [vmem:[%s3 + $0x5c] sm:$0xf]
    %v331 = vld [vmem:[%s3 + $0x60] sm:$0xf]
    %v332 = vld [vmem:[%s3 + $0x64] sm:$0xf]
    %v333 = vld [vmem:[%s3 + $0x68] sm:$0xf]
    %v334 = vld [vmem:[%s3 + $0x6c] sm:$0xf]
    %v335 = vld [vmem:[%s3 + $0x70] sm:$0xf]
    %v336 = vld [vmem:[%s3 + $0x74] sm:$0xf]
    %v337 = vld [vmem:[%s3 + $0x78] sm:$0xf]
    %v338 = vld [vmem:[%s3 + $0x7c] sm:$0xf]
    %v340 = vlaneseq
    %v341 = vshrl.u32 %v340, 7
    %v342 = vsub.s32 0, %v341
    %v343 = vrot.slane %v23, %v342
    %v377 = vunpack.c.l.b16 %v307
    %v378 = vunpack.c.l.b16 %v308
    %v379 = vunpack.c.l.b16 %v309
    %v380 = vunpack.c.l.b16 %v310
    %v381 = vunpack.c.l.b16 %v311
    %v382 = vunpack.c.l.b16 %v312
    %v383 = vunpack.c.l.b16 %v313
    %v384 = vunpack.c.l.b16 %v314
    %v385 = vunpack.c.l.b16 %v315
    %v386 = vunpack.c.l.b16 %v316
    %v387 = vunpack.c.l.b16 %v317
    %v388 = vunpack.c.l.b16 %v318
    %v389 = vunpack.c.l.b16 %v319
    %v390 = vunpack.c.l.b16 %v320
    %v391 = vunpack.c.l.b16 %v321
    %v392 = vunpack.c.l.b16 %v322
    %v393 = vunpack.c.l.b16 %v323
    %v394 = vunpack.c.l.b16 %v324
    %v395 = vunpack.c.l.b16 %v325
    %v396 = vunpack.c.l.b16 %v326
    %v397 = vunpack.c.l.b16 %v327
    %v398 = vunpack.c.l.b16 %v328
    %v399 = vunpack.c.l.b16 %v329
    %v400 = vunpack.c.l.b16 %v330
    %v401 = vunpack.c.l.b16 %v331
    %v402 = vunpack.c.l.b16 %v332
    %v403 = vunpack.c.l.b16 %v333
    %v404 = vunpack.c.l.b16 %v334
    %v405 = vunpack.c.l.b16 %v335
    %v406 = vunpack.c.l.b16 %v336
    %v407 = vunpack.c.l.b16 %v337
    %v408 = vunpack.c.l.b16 %v338
    %v409 = vpack.c.b16 %v378, %v377
    %v410 = vpack.c.b16 %v380, %v379
    %v411 = vpack.c.b16 %v382, %v381
    %v412 = vpack.c.b16 %v384, %v383
    %v413 = vpack.c.b16 %v386, %v385
    %v414 = vpack.c.b16 %v388, %v387
    %v415 = vpack.c.b16 %v390, %v389
    %v416 = vpack.c.b16 %v392, %v391
    %v417 = vpack.c.b16 %v394, %v393
    %v418 = vpack.c.b16 %v396, %v395
    %v419 = vpack.c.b16 %v398, %v397
    %v420 = vpack.c.b16 %v400, %v399
    %v421 = vpack.c.b16 %v402, %v401
    %v422 = vpack.c.b16 %v404, %v403
    %v423 = vpack.c.b16 %v406, %v405
    %v424 = vpack.c.b16 %v408, %v407
    %441 = vmatprep.subr.bf16.mxu0 0
    %442 = vmatpush1.bf16.msra.mxu0 %v409
    %443 = vmatprep.subr.bf16.mxu0 0
    %444 = vmatpush1.bf16.msra.mxu0 %v410
    %445 = vmatprep.subr.bf16.mxu0 0
    %446 = vmatpush1.bf16.msra.mxu0 %v411
    %447 = vmatprep.subr.bf16.mxu0 0
    %448 = vmatpush1.bf16.msra.mxu0 %v412
    %449 = vmatprep.subr.bf16.mxu0 0
    %450 = vmatpush1.bf16.msra.mxu0 %v413
    %451 = vmatprep.subr.bf16.mxu0 0
    %452 = vmatpush1.bf16.msra.mxu0 %v414
    %453 = vmatprep.subr.bf16.mxu0 0
    %454 = vmatpush1.bf16.msra.mxu0 %v415
    %455 = vmatprep.subr.bf16.mxu0 0
    %456 = vmatpush1.bf16.msra.mxu0 %v416
    %457 = vmatprep.subr.bf16.mxu0 0
    %458 = vmatpush1.bf16.msra.mxu0 %v417
    %459 = vmatprep.subr.bf16.mxu0 0
    %460 = vmatpush1.bf16.msra.mxu0 %v418
    %461 = vmatprep.subr.bf16.mxu0 0
    %462 = vmatpush1.bf16.msra.mxu0 %v419
    %463 = vmatprep.subr.bf16.mxu0 0
    %464 = vmatpush1.bf16.msra.mxu0 %v420
    %465 = vmatprep.subr.bf16.mxu0 0
    %466 = vmatpush1.bf16.msra.mxu0 %v421
    %467 = vmatprep.subr.bf16.mxu0 0
    %468 = vmatpush1.bf16.msra.mxu0 %v422
    %469 = vmatprep.subr.bf16.mxu0 0
    %470 = vmatpush1.bf16.msra.mxu0 %v423
    %471 = vmatprep.subr.bf16.mxu0 0
    %472 = vmatpush1.bf16.msra.mxu0 %v424
    %473 = vmatprep.mubr.bf16.mxu0 %v306
    %474 = vmatmul.mubr.bf16.gmra.mrb[0].mxu0 %v305
    %v475 = vpop.f32.mrb[0].mxu0
    %v476 = vadd.f32 %v343, %v475
    %v477 = vpop.f32.mrb[0].mxu0
    %v478 = vpop.f32.mrb[0].mxu0
    %v479 = vpop.f32.mrb[0].mxu0
    %480 = vdwg.mxu0
    %481 = vst [vmem:[#allocation2] sm:$0xff] %v476
    // Predicated region
    $region18: #{_forward.1} parent=1 // pred_check
      _
    $region19: #{_forward.1} parent=1 // pred_check_branch
      %483 = sbr.rel (0) target = $region21
    $region20: #{_forward.1} parent=1 // pred_region
      %s485 = ssub.s32 128, 128
      %486 = vsyncadd [#allocation3], %s485
      %s488 = sshll.u32 [#allocation2], 4
      %s489 = int_to_ptr.vmem [resolvable:$true] %s488
      %491 = dma.vmem_to_hbm [thread:$0]  %s489, 128, %s4, [#allocation3]
    $region21: #{_forward.1} parent=1 // pred_fallthru
      _
    // Predicated region
    $region22: #{_forward.1} parent=1 // pred_check
      _
    $region23: #{_forward.1} parent=1 // pred_check_branch
      %493 = sbr.rel (0) target = $region25
    $region24: #{_forward.1} parent=1 // pred_region
      %494 = dma.done [#allocation3], 128
    $region25: #{_forward.1} parent=1 // pred_fallthru
      _
    %495 = vsyncpa [#allocation3], 1

</llo_original>
